<compile_context>
chip_gen: v6e
topology: v6e:2x2x1
jax: 0.10.0
libtpu: 0.0.40
codegen_flags: <defaults>
</compile_context>

<pallas_src>
import jax
import jax.numpy as jnp
from jax.experimental import pallas as pl
from jax.experimental.pallas import tpu as pltpu


# ---------------------------------------------------------------------------
# Synthetic stand-ins for the `bk` background-knowledge module (deterministic).
# rgb_r / rgb_g / rgb_b are ADJACENT columns -> static contiguous slice works.
# ---------------------------------------------------------------------------
VAR_DTYPE_GROUP_OBJS = "var_dtype_group_objs"
PROP_IDX_DICT = {"rgb_r": 4, "rgb_g": 5, "rgb_b": 6}
NUM_PROPS = 8
_RGB_START = PROP_IDX_DICT["rgb_r"]          # columns 4:7 are contiguous

_MAX_LANE_TILE = 32768                       # (8, 32768) f32 block = 1 MiB


def _round_up(x, m):
    return ((x + m - 1) // m) * m


# ---------------------------------------------------------------------------
# Pallas kernels
# ---------------------------------------------------------------------------
def _eq_all_single_kernel(a_ref, b_ref, out_ref):
    # Whole (zero-padded) slab fits in one block: exact compare, integer-domain
    # AND (min), single XLU reduce, one (1,1) float store.
    eq = (a_ref[...] == b_ref[...]).astype(jnp.int32)              # [8, L]
    out_ref[...] = jnp.min(eq, axis=(0, 1), keepdims=True).astype(jnp.float32)


def _eq_all_tiled_kernel(a_ref, b_ref, out_ref, acc_ref):
    # Grid = (halves, steps).  Per step: VPU-only compare + elementwise min
    # into an int32 VMEM scratch.  Single XLU reduce + masked (1,1) store only
    # on the last step of each half.
    step = pl.program_id(1)

    @pl.when(step == 0)
    def _init():
        acc_ref[...] = jnp.full_like(acc_ref, 1)

    acc_ref[...] = jnp.minimum(
        acc_ref[...], (a_ref[...] == b_ref[...]).astype(jnp.int32))

    @pl.when(step == pl.num_programs(1) - 1)
    def _finalize():
        out_ref[...] = jnp.min(acc_ref[...], axis=(0, 1),
                               keepdims=True).astype(jnp.float32)


def _symmetry_flat_equal(flat, max_lane_tile=_MAX_LANE_TILE):
    """flat: [2, M] float32 (contiguous RGB values of both groups).

    Returns a scalar float32: 1.0 iff every element of group 0 exactly equals
    the corresponding element of group 1.  Padding (zeros in BOTH groups)
    cannot change the AND.
    """
    m = flat.shape[-1]
    lanes = _round_up(max(1, -(-m // 8)), 128)       # lanes per 8-sublane slab

    if lanes <= max_lane_tile:
        halves, steps, tile = 1, 1, lanes            # single-block fast path
    else:
        halves = 2                                   # v7x megacore split
        per_half = _round_up(-(-lanes // halves), 128)
        tile = min(per_half, max_lane_tile)
        per_half = _round_up(per_half, tile)
        steps = per_half // tile
        lanes = halves * per_half

    flat = jnp.pad(flat, ((0, 0), (0, 8 * lanes - m)))
    slab = flat.reshape(2, 8, lanes)
    a, b = slab[0], slab[1]

    if halves == 1:
        out = pl.pallas_call(
            _eq_all_single_kernel,
            out_shape=jax.ShapeDtypeStruct((1, 1), jnp.float32),
            grid_spec=pltpu.PrefetchScalarGridSpec(
                num_scalar_prefetch=0,
                grid=(1,),
                in_specs=[pl.BlockSpec((8, tile), lambda i: (0, 0)),
                          pl.BlockSpec((8, tile), lambda i: (0, 0))],
                out_specs=pl.BlockSpec((1, 1), lambda i: (0, 0)),
            ),
            compiler_params=pltpu.CompilerParams(
                dimension_semantics=("arbitrary",)),
        )(a, b)
        return out[0, 0]

    out = pl.pallas_call(
        _eq_all_tiled_kernel,
        out_shape=jax.ShapeDtypeStruct((halves, 1), jnp.float32),
        grid_spec=pltpu.PrefetchScalarGridSpec(
            num_scalar_prefetch=0,
            grid=(halves, steps),
            in_specs=[
                pl.BlockSpec((8, tile), lambda h, i: (0, h * steps + i)),
                pl.BlockSpec((8, tile), lambda h, i: (0, h * steps + i)),
            ],
            out_specs=pl.BlockSpec((1, 1), lambda h, i: (h, 0)),
            scratch_shapes=[pltpu.VMEM((8, tile), jnp.int32)],
        ),
        compiler_params=pltpu.CompilerParams(
            dimension_semantics=("parallel", "arbitrary")),
    )(a, b)
    return jnp.min(out)                               # AND of per-half partials


# ---------------------------------------------------------------------------
# Fused forward path (single jit: sort -> gather -> slice -> pack -> kernel).
# ---------------------------------------------------------------------------
@jax.jit
def _forward_impl(ocms):
    # ocms: [2, N, P] float32
    # TODO(synk): jnp.argsort is stable while torch.sort is not; on ties in the
    # sort key (column 1) with differing RGB the row pairing can diverge.
    order = jnp.argsort(ocms[:, :, 1], axis=1)                       # [2, N]
    sorted_ocms = jnp.take_along_axis(ocms, order[:, :, None], axis=1)
    rgb = sorted_ocms[:, :, _RGB_START:_RGB_START + 3]               # [2, N, 3]
    flat = rgb.reshape(2, -1)                                        # [2, 3N]
    return _symmetry_flat_equal(flat)                                # scalar f32


def vfg_symmetry_color_forward(args_dict):
    group_data = args_dict[VAR_DTYPE_GROUP_OBJS]["ocms"]

    if len(group_data) != 2:
        return 0.0

    g0 = jnp.asarray(group_data[0], jnp.float32)
    g1 = jnp.asarray(group_data[1], jnp.float32)
    if g0.shape != g1.shape:
        # Ragged groups cannot be row-paired -> not symmetric.
        return 0.0

    ocms = jnp.stack([g0, g1], axis=0)                               # [2, N, P]
    # Single device->host sync, matching the module's python-float return.
    return float(jax.device_get(_forward_impl(ocms)))


# ---------------------------------------------------------------------------
# Self-test with deterministic small inputs.
# ---------------------------------------------------------------------------
if __name__ == "__main__":
    key = jax.random.PRNGKey(0)
    N, P = 4, NUM_PROPS

    base = jax.random.uniform(key, (N, P), jnp.float32)
    # Distinct sort keys in column 1 so the per-group sort is unambiguous.
    base = base.at[:, 1].set(jnp.array([0.3, 0.1, 0.7, 0.5], jnp.float32))

    perm = jnp.array([2, 0, 3, 1], jnp.int32)
    g0 = base
    g1 = base[perm]                 # same objects, shuffled order -> symmetric

    # Case 1: colors symmetric across the two groups -> 1.0
    args_match = {VAR_DTYPE_GROUP_OBJS: {"ocms": jnp.stack([g0, g1], axis=0)}}

    # Case 2: break one rgb value in group 1 -> 0.0
    g1_bad = g1.at[0, PROP_IDX_DICT["rgb_g"]].add(0.25)
    args_mismatch = {VAR_DTYPE_GROUP_OBJS: {"ocms": jnp.stack([g0, g1_bad], axis=0)}}

    # Case 3: wrong group count -> 0.0 without launching the kernel
    args_wrong_count = {VAR_DTYPE_GROUP_OBJS: {"ocms": jnp.stack([g0, g1, g0], axis=0)}}

    out_match = vfg_symmetry_color_forward(args_match)
    out_mismatch = vfg_symmetry_color_forward(args_mismatch)
    out_wrong = vfg_symmetry_color_forward(args_wrong_count)

    assert out_match == 1.0, out_match
    assert out_mismatch == 0.0, out_mismatch
    assert out_wrong == 0.0, out_wrong

    # Exercise the tiled / 2-half (megacore) kernel path with a reduced tile
    # cap so both code paths are compiled and checked at small sizes.
    flat_half = jax.random.uniform(jax.random.PRNGKey(1), (1, 5000), jnp.float32)
    flat_pair = jnp.concatenate([flat_half, flat_half], axis=0)   # identical
    tiled_fn = jax.jit(lambda x: _symmetry_flat_equal(x, max_lane_tile=128))
    same = tiled_fn(flat_pair)
    flat_bad = flat_pair.at[1, 4321].add(1.0)                     # deep in 2nd half
    diff = tiled_fn(flat_bad)
    jax.block_until_ready((same, diff))

    assert float(same) == 1.0, same
    assert float(diff) == 0.0, diff

    print("KERNEL_OK")
</pallas_src>

<mosaic_0001>
module attributes {stable_mosaic.version = 11 : i64} {
  func.func @_eq_all_single_kernel(%arg0: i32, %arg1: memref<8x128xf32, #tpu.memory_space<vmem>>, %arg2: memref<8x128xf32, #tpu.memory_space<vmem>>, %arg3: memref<1x1xf32, #tpu.memory_space<vmem>>) attributes {dimension_semantics = [#tpu.dimension_semantics<arbitrary>], iteration_bounds = array<i64: 1>, scalar_prefetch = 0 : i64, scratch_operands = 0 : i64, tpu.core_type = #tpu.core_type<tc>, window_params = [{pipeline_mode = #tpu.pipeline_mode<synchronous>, transform_indices = @transform_0, window_bounds = array<i64: 8, 128>}, {pipeline_mode = #tpu.pipeline_mode<synchronous>, transform_indices = @transform_1, window_bounds = array<i64: 8, 128>}, {pipeline_mode = #tpu.pipeline_mode<synchronous>, transform_indices = @transform_2, window_bounds = array<i64: 1, 1>}]} {
    %c0 = arith.constant 0 : index
    %c0_0 = arith.constant 0 : index
    %0 = vector.load %arg1[%c0, %c0_0] : memref<8x128xf32, #tpu.memory_space<vmem>>, vector<8x128xf32>
    %c0_1 = arith.constant 0 : index
    %c0_2 = arith.constant 0 : index
    %1 = vector.load %arg2[%c0_1, %c0_2] : memref<8x128xf32, #tpu.memory_space<vmem>>, vector<8x128xf32>
    %2 = arith.cmpf oeq, %0, %1 : vector<8x128xf32>
    %3 = arith.extui %2 : vector<8x128xi1> to vector<8x128xi32>
    %4 = vector.shape_cast %3 : vector<8x128xi32> to vector<1x8x128xi32>
    %cst = arith.constant dense<2147483647> : vector<1xi32>
    %5 = vector.multi_reduction <minsi>, %4, %cst [1, 2] : vector<1x8x128xi32> to vector<1xi32>
    %6 = vector.shape_cast %5 : vector<1xi32> to vector<1x1x1xi32>
    %7 = vector.extract %6[0, 0, 0] : i32 from vector<1x1x1xi32>
    %8 = vector.broadcast %7 : i32 to vector<1x1xi32>
    %9 = arith.sitofp %8 : vector<1x1xi32> to vector<1x1xf32>
    %c0_3 = arith.constant 0 : index
    %c0_4 = arith.constant 0 : index
    %10 = vector.load %arg3[%c0_3, %c0_4] : memref<1x1xf32, #tpu.memory_space<vmem>>, vector<1x1xf32>
    tpu.vector_store %arg3[%c0_3, %c0_4], %9 {strides = array<i32>} : memref<1x1xf32, #tpu.memory_space<vmem>>, vector<1x1xf32>,
    return
  }
  func.func @transform_0(%arg0: i32) -> (i32, i32) {
    %c0_i32 = arith.constant 0 : i32
    %c0_i32_0 = arith.constant 0 : i32
    %c0_i32_1 = arith.constant 0 : i32
    return %c0_i32, %c0_i32_0 : i32, i32
  }
  func.func @transform_1(%arg0: i32) -> (i32, i32) {
    %c0_i32 = arith.constant 0 : i32
    %c0_i32_0 = arith.constant 0 : i32
    %c0_i32_1 = arith.constant 0 : i32
    return %c0_i32, %c0_i32_0 : i32, i32
  }
  func.func @transform_2(%arg0: i32) -> (i32, i32) {
    %c0_i32 = arith.constant 0 : i32
    %c0_i32_0 = arith.constant 0 : i32
    %c0_i32_1 = arith.constant 0 : i32
    return %c0_i32, %c0_i32_0 : i32, i32
  }
}

</mosaic_0001>

<llo_original>
// kernel: _forward_impl.1
$region0: #{_forward_impl.1}
  #allocation0 [shape = 'u32[]', space=smem, size = 0x4, offset = 0x4, fixed_abs, tag = 'smem constant byte address 0x4 - core index']
  #allocation1 [shape = 'u32[144,128]{1,0:T(1,128)}', space=vmem, size = 0x12000, scoped, tag = 'internal scratch']
  %s0 = inlined_call_operand.vmem [shape: f32[8,128], index: 0, kind: input, shape index: {}]
  %s1 = inlined_call_operand.vmem [shape: f32[8,128], index: 1, kind: input, shape index: {}]
  %s2 = inlined_call_operand.hbm [shape: f32[1,1], index: 2, kind: output, shape index: {}]
  %s3 = sld [smem:[#allocation0]]
  $region18: #{_forward_impl.1} parent=0
    _
  %s5 = ssub.s32 1, %s3
  %s6 = scalar_select 0, %s5, %s3
  $region1: #{_forward_impl.1} parent=0
    #allocation2 [shape = 'u8[512]{0}', space=vmem, size = 0x400, scoped, tag = 'output window, operand 0, single buffered']
    #allocation3 [shape = 's32[1]{0}', space=sflag, size = 0x4, scoped, tag = 'scoped memory for _forward_impl.1']
    %7 = vsyncpa [#allocation3], 0
    // Predicated region
    $region2: #{_forward_impl.1} parent=1 // pred_check
      _
    $region3: #{_forward_impl.1} parent=1 // pred_check_branch
      %9 = sbr.rel (0) target = $region5
    $region4: #{_forward_impl.1} parent=1 // pred_region
      _
    $region5: #{_forward_impl.1} parent=1 // pred_fallthru
      _
    // Predicated region
    $region6: #{_forward_impl.1} parent=1 // pred_check
      _
    $region7: #{_forward_impl.1} parent=1 // pred_check_branch
      %11 = sbr.rel (0) target = $region9
    $region8: #{_forward_impl.1} parent=1 // pred_region
      _
    $region9: #{_forward_impl.1} parent=1 // pred_fallthru
      _
    %v12 = vld [vmem:[%s0] sm:$0xff]
    %v13 = vld [vmem:[%s1] sm:$0xff]
    %vm14 = vcmp.eq.f32.partialorder %v12, %v13
    %v15 = vsel %vm14, 1, 0
    %v16 = vand.u32 %v15, 65535
    %v17 = vshra.s32 %v15, 16
    %v18 = vcvt.s32.f32 %v16
    %v19 = vcvt.s32.f32 %v17
    %20 = vmin.xlane.f32.xlu0 %v19
    %v21 = vpop.xlane.xlu0 %20
    %vm22 = vcmp.eq.f32.partialorder %v19, %v21
    %v23 = vsel %vm22, %v18, inf
    %24 = vmin.xlane.f32.xlu0 %v23
    %v25 = vpop.xlane.xlu0 %24
    %v26 = vcvt.f32.s32 %v25
    %v27 = vcvt.f32.s32 %v21
    %v28 = vshll.u32 %v27, 16
    %v29 = vadd.s32 %v28, %v26
    %v30 = vrot.slane %v29, 4
    %vm31 = vcmp.lt.s32.totalorder %v29, %v30
    %v32 = vsel %vm31, %v29, %v30
    %v33 = vrot.slane %v32, 2
    %vm34 = vcmp.lt.s32.totalorder %v32, %v33
    %v35 = vsel %vm34, %v32, %v33
    %v36 = vrot.slane %v35, 1
    %vm37 = vcmp.lt.s32.totalorder %v35, %v36
    %v38 = vsel %vm37, %v35, %v36
    %s39 = vtos %v38
    %v40 = vstv %s39
    %v41 = vcvt.s32.f32 %v40
    %vm42 = vcmask 0
    %43 = vst.msk [vmem:[#allocation2] sm:$0x1] %vm42, %v41
    // Predicated region
    $region10: #{_forward_impl.1} parent=1 // pred_check
      _
    $region11: #{_forward_impl.1} parent=1 // pred_check_branch
      %45 = sbr.rel (0) target = $region13
    $region12: #{_forward_impl.1} parent=1 // pred_region
      %s47 = ssub.s32 16, 16
      %48 = vsyncadd [#allocation3], %s47
      %s50 = sshll.u32 [#allocation2], 4
      %s51 = int_to_ptr.vmem [resolvable:$true] %s50
      %53 = dma.vmem_to_hbm [thread:$0]  %s51, 16, %s2, [#allocation3]
    $region13: #{_forward_impl.1} parent=1 // pred_fallthru
      _
    // Predicated region
    $region14: #{_forward_impl.1} parent=1 // pred_check
      _
    $region15: #{_forward_impl.1} parent=1 // pred_check_branch
      %55 = sbr.rel (0) target = $region17
    $region16: #{_forward_impl.1} parent=1 // pred_region
      %56 = dma.done [#allocation3], 16
    $region17: #{_forward_impl.1} parent=1 // pred_fallthru
      _
    %57 = vsyncpa [#allocation3], 1

</llo_original>
